<compile_context>
chip_gen: v5e
topology: v5e:2x2
jax: 0.10.0
libtpu: 0.0.40
codegen_flags: <defaults>
</compile_context>

<pallas_src>
import math

import jax
import jax.numpy as jnp
from jax.experimental import pallas as pl
from jax.experimental.pallas import tpu as pltpu


def _round_up(a: int, b: int) -> int:
    return ((a + b - 1) // b) * b


# ---------------------------------------------------------------------------
# Kernels
# ---------------------------------------------------------------------------
def _matmul_kernel(x_ref, w_ref, o_ref, acc_ref):
    # x_ref: (tm, tk), w_ref: (tk, tn), o_ref: (tm, tn), acc_ref: (tm, tn) f32
    k = pl.program_id(2)
    partial = jnp.dot(x_ref[...], w_ref[...], preferred_element_type=jnp.float32)

    @pl.when(k == 0)
    def _():
        acc_ref[...] = partial          # direct assign: no zero-init round trip

    @pl.when(k > 0)
    def _():
        acc_ref[...] += partial

    @pl.when(k == pl.num_programs(2) - 1)
    def _():
        o_ref[...] = acc_ref[...].astype(o_ref.dtype)


def _matmul_kernel_single_k(x_ref, w_ref, o_ref):
    # K fits in one tile: no f32 scratch, write the output tile directly.
    o_ref[...] = jnp.dot(
        x_ref[...], w_ref[...], preferred_element_type=jnp.float32
    ).astype(o_ref.dtype)


# ---------------------------------------------------------------------------
# Tile selection (generation-aware)
# ---------------------------------------------------------------------------
def _tpu_generation() -> str:
    try:
        kind = jax.devices()[0].device_kind.lower()
    except Exception:  # pragma: no cover - e.g. no devices visible
        return "unknown"
    if "v5 lite" in kind or "v5e" in kind or "v5lite" in kind:
        return "v5e"
    if "v6" in kind:
        return "v6e"
    if "v7" in kind or "7x" in kind:
        return "v7x"
    return "unknown"


# (target_tm, target_tn, target_tk, vmem_limit_bytes)
_TILE_TARGETS = {
    "v5e": (512, 512, 1024, 100 * 2**20),     # balance ~240 FLOP/B
    "v6e": (1024, 1024, 1024, 100 * 2**20),   # balance ~650 FLOP/B, 128 MiB VMEM
    "v7x": (512, 512, 2048, 48 * 2**20),      # balance ~311 FLOP/B, 64 MiB VMEM
    "unknown": (512, 512, 1024, 64 * 2**20),
}


def _working_set_bytes(tm: int, tn: int, tk: int, itemsize: int) -> int:
    # double-buffered x/w/out tiles + f32 accumulator
    return (2 * tm * tk * itemsize + 2 * tk * tn * itemsize
            + 2 * tm * tn * itemsize + tm * tn * 4)


# ---------------------------------------------------------------------------
# Public API
# ---------------------------------------------------------------------------
def prepare_linear_weight(W: jax.Array) -> jax.Array:
    """One-time init-path transform of the module weight.

    W: [out_features, in_features] (PyTorch Linear layout).
    Returns wt: [in_features, out_features], the lane-dense RHS the kernel
    consumes. Call this ONCE when the parameter is created so the transpose is
    not re-materialized on every forward call.
    """
    return jnp.asarray(W).T


def linear_forward(x: jax.Array, wt: jax.Array, *,
                   tm: int | None = None, tn: int | None = None,
                   tk: int | None = None) -> jax.Array:
    """y = x @ wt where wt = W.T  (PyTorch Linear.forward semantics).

    x:  [..., in_features]
    wt: [in_features, out_features]  (from prepare_linear_weight)
    """
    in_features, out_features = wt.shape
    assert x.shape[-1] == in_features

    lead_shape = x.shape[:-1]
    m = math.prod(lead_shape) if lead_shape else 1
    out_dtype = x.dtype

    if m == 0:  # zero-sized leading dims: nothing to compute
        return jnp.zeros((*lead_shape, out_features), dtype=out_dtype)

    x2d = x.reshape(m, in_features)
    if wt.dtype != x.dtype:
        # TODO(synk): for weight-dominated shapes, cast the weight once at init
        # (e.g. store it in bf16) instead of per call.
        wt = wt.astype(x.dtype)

    gen = _tpu_generation()
    tgt_tm, tgt_tn, tgt_tk, vmem_limit = _TILE_TARGETS[gen]
    if tm is not None:
        tgt_tm = tm
    if tn is not None:
        tgt_tn = tn
    if tk is not None:
        tgt_tk = tk

    itemsize = jnp.dtype(x.dtype).itemsize
    sublane = max(8, 32 // max(itemsize, 1))  # f32->8, bf16->16, int8/fp8->32

    # Clamp tiles to the (aligned) problem size: lane-dense N (mult of 128),
    # sublane-aligned M.
    tm_ = min(tgt_tm, _round_up(m, sublane))
    tn_ = min(tgt_tn, _round_up(out_features, 128))
    tk_ = min(tgt_tk, _round_up(in_features, 128))

    # Keep the double-buffered working set under the VMEM budget.
    budget = int(vmem_limit * 0.85)
    while _working_set_bytes(tm_, tn_, tk_, itemsize) > budget \
            and tk_ > 256 and tk_ % 256 == 0:
        tk_ //= 2
    while _working_set_bytes(tm_, tn_, tk_, itemsize) > budget \
            and tm_ > 256 and tm_ % 256 == 0:
        tm_ //= 2
    while _working_set_bytes(tm_, tn_, tk_, itemsize) > budget \
            and tn_ > 256 and tn_ % 256 == 0:
        tn_ //= 2

    m_pad = _round_up(m, tm_)
    n_pad = _round_up(out_features, tn_)
    k_pad = _round_up(in_features, tk_)

    # v7x has two TensorCores: make sure there are >= 2 parallel (i, j) blocks.
    if gen == "v7x" and (m_pad // tm_) * (n_pad // tn_) < 2 and tn_ % 256 == 0:
        tn_ //= 2
        n_pad = _round_up(out_features, tn_)

    # Conditional padding: only touch HBM again if the shapes really need it.
    if (m_pad, k_pad) != (m, in_features):
        x2d = jnp.pad(x2d, ((0, m_pad - m), (0, k_pad - in_features)))
    if (k_pad, n_pad) != (in_features, out_features):
        wt = jnp.pad(wt, ((0, k_pad - in_features), (0, n_pad - out_features)))

    grid_m = m_pad // tm_
    grid_n = n_pad // tn_
    k_steps = k_pad // tk_

    # Truthful streaming-traffic estimate: x re-read per N-tile, W per M-tile.
    cost = pl.CostEstimate(
        flops=2 * m_pad * n_pad * k_pad,
        transcendentals=0,
        bytes_accessed=(m_pad * k_pad * grid_n
                        + k_pad * n_pad * grid_m
                        + m_pad * n_pad) * itemsize,
    )

    if k_steps == 1:
        out2d = pl.pallas_call(
            _matmul_kernel_single_k,
            out_shape=jax.ShapeDtypeStruct((m_pad, n_pad), out_dtype),
            grid_spec=pltpu.PrefetchScalarGridSpec(
                num_scalar_prefetch=0,
                grid=(grid_m, grid_n),
                in_specs=[
                    pl.BlockSpec((tm_, tk_), lambda i, j: (i, 0)),
                    pl.BlockSpec((tk_, tn_), lambda i, j: (0, j)),
                ],
                out_specs=pl.BlockSpec((tm_, tn_), lambda i, j: (i, j)),
            ),
            compiler_params=pltpu.CompilerParams(
                dimension_semantics=("parallel", "parallel"),
                vmem_limit_bytes=vmem_limit,
            ),
            cost_estimate=cost,
        )(x2d, wt)
    else:
        out2d = pl.pallas_call(
            _matmul_kernel,
            out_shape=jax.ShapeDtypeStruct((m_pad, n_pad), out_dtype),
            grid_spec=pltpu.PrefetchScalarGridSpec(
                num_scalar_prefetch=0,
                grid=(grid_m, grid_n, k_steps),
                in_specs=[
                    pl.BlockSpec((tm_, tk_), lambda i, j, k: (i, k)),
                    pl.BlockSpec((tk_, tn_), lambda i, j, k: (k, j)),
                ],
                out_specs=pl.BlockSpec((tm_, tn_), lambda i, j, k: (i, j)),
                scratch_shapes=[pltpu.VMEM((tm_, tn_), jnp.float32)],
            ),
            compiler_params=pltpu.CompilerParams(
                dimension_semantics=("parallel", "parallel", "arbitrary"),
                vmem_limit_bytes=vmem_limit,
            ),
            cost_estimate=cost,
        )(x2d, wt)

    if (m_pad, n_pad) != (m, out_features):
        out2d = out2d[:m, :out_features]
    return out2d.reshape(*lead_shape, out_features)


def linear_apply(x: jax.Array, W: jax.Array, **tile_kwargs) -> jax.Array:
    """Convenience wrapper matching the module directly (W: [out, in]).

    Prefer prepare_linear_weight(W) once at init + linear_forward in hot loops.
    """
    return linear_forward(x, prepare_linear_weight(W), **tile_kwargs)


def init_linear_weight(key, in_features: int, out_features: int, dtype=jnp.float32):
    """trunc_normal init matching nn.init.trunc_normal_(W, 0, std, -3*std, 3*std)."""
    std = (2.0 / (in_features + out_features)) ** 0.5
    w = jax.random.truncated_normal(
        key, lower=-3.0, upper=3.0, shape=(out_features, in_features),
        dtype=jnp.float32,
    ) * std
    return w.astype(dtype)


if __name__ == "__main__":
    key = jax.random.PRNGKey(0)
    k_w, k_x, k_w2, k_x2 = jax.random.split(key, 4)

    # Small module-consistent shapes: batch=2, seq=8, in=32, out=64.
    batch, seq, in_features, out_features = 2, 8, 32, 64
    W = init_linear_weight(k_w, in_features, out_features, dtype=jnp.float32)
    x = jax.random.normal(k_x, (batch, seq, in_features), dtype=jnp.float32)

    wt = prepare_linear_weight(W)          # one-time init-path transpose
    y = linear_forward(x, wt)
    jax.block_until_ready(y)

    y_ref = x @ W.T
    assert y.shape == (batch, seq, out_features)
    assert jnp.allclose(y, y_ref, atol=1e-5, rtol=1e-5)

    # Second check: force small tiles so the multi-k-step accumulator path runs.
    in2, out2, m2 = 256, 256, 32
    W2 = init_linear_weight(k_w2, in2, out2, dtype=jnp.float32)
    x2 = jax.random.normal(k_x2, (m2, in2), dtype=jnp.float32)
    y2 = linear_forward(x2, prepare_linear_weight(W2), tm=16, tn=128, tk=128)
    jax.block_until_ready(y2)
    y2_ref = jnp.dot(x2, W2.T, precision=jax.lax.Precision.HIGHEST)
    assert jnp.allclose(y2, y2_ref, atol=1e-2, rtol=1e-2)

    print("KERNEL_OK")
</pallas_src>

<mosaic_0001>
module attributes {stable_mosaic.version = 11 : i64} {
  func.func @_matmul_kernel_single_k(%arg0: i32, %arg1: i32, %arg2: memref<16x128xf32, #tpu.memory_space<vmem>>, %arg3: memref<128x128xf32, #tpu.memory_space<vmem>>, %arg4: memref<16x128xf32, #tpu.memory_space<vmem>>) attributes {dimension_semantics = [#tpu.dimension_semantics<parallel>, #tpu.dimension_semantics<parallel>], iteration_bounds = array<i64: 1, 1>, scalar_prefetch = 0 : i64, scratch_operands = 0 : i64, tpu.core_type = #tpu.core_type<tc>, window_params = [{transform_indices = @transform_0, window_bounds = array<i64: 16, 128>}, {transform_indices = @transform_1, window_bounds = array<i64: 128, 128>}, {transform_indices = @transform_2, window_bounds = array<i64: 16, 128>}]} {
    %c0 = arith.constant 0 : index
    %c0_0 = arith.constant 0 : index
    %0 = vector.load %arg2[%c0, %c0_0] : memref<16x128xf32, #tpu.memory_space<vmem>>, vector<16x128xf32>
    %c0_1 = arith.constant 0 : index
    %c0_2 = arith.constant 0 : index
    %1 = vector.load %arg3[%c0_1, %c0_2] : memref<128x128xf32, #tpu.memory_space<vmem>>, vector<128x128xf32>
    %cst = arith.constant dense<0.000000e+00> : vector<16x128xf32>
    %2 = tpu.matmul %0, %1, %cst {dimension_numbers = #tpu.dot_dimension_numbers<[1], [0], [0], [1], [0, 0, 1, 1], [], []>} : vector<16x128xf32>, vector<128x128xf32>, vector<16x128xf32> -> vector<16x128xf32>
    %c0_3 = arith.constant 0 : index
    %c0_4 = arith.constant 0 : index
    %3 = vector.load %arg4[%c0_3, %c0_4] : memref<16x128xf32, #tpu.memory_space<vmem>>, vector<16x128xf32>
    tpu.vector_store %arg4[%c0_3, %c0_4], %2 {strides = array<i32>} : memref<16x128xf32, #tpu.memory_space<vmem>>, vector<16x128xf32>,
    return
  }
  func.func @transform_0(%arg0: i32, %arg1: i32) -> (i32, i32) {
    %c0_i32 = arith.constant 0 : i32
    %c0_i32_0 = arith.constant 0 : i32
    return %arg0, %c0_i32 : i32, i32
  }
  func.func @transform_1(%arg0: i32, %arg1: i32) -> (i32, i32) {
    %c0_i32 = arith.constant 0 : i32
    %c0_i32_0 = arith.constant 0 : i32
    return %c0_i32, %arg1 : i32, i32
  }
  func.func @transform_2(%arg0: i32, %arg1: i32) -> (i32, i32) {
    %c0_i32 = arith.constant 0 : i32
    return %arg0, %arg1 : i32, i32
  }
}

</mosaic_0001>

<llo_original>
// kernel: tpu_custom_call.1
$region0: #{tpu_custom_call.1}
  #allocation0 [shape = 'u32[]', space=smem, size = 0x4, offset = 0x4, fixed_abs, tag = 'smem constant byte address 0x4 - core index']
  #allocation1 [shape = 'u32[72,128]{1,0:T(1,128)}', space=vmem, size = 0x9000, scoped, tag = 'internal scratch']
  %s0 = inlined_call_operand.hbm [shape: f32[16,128], index: 0, kind: input, shape index: {}]
  %s1 = inlined_call_operand.hbm [shape: f32[128,128], index: 1, kind: input, shape index: {}]
  %s2 = inlined_call_operand.hbm [shape: f32[16,128], index: 2, kind: output, shape index: {}]
  %s3 = sld [smem:[#allocation0]]
  $region26: #{tpu_custom_call.1} parent=0
    _
  %s5 = ssub.s32 1, %s3
  %s6 = scalar_select 0, %s5, %s3
  $region1: #{tpu_custom_call.1} parent=0
    #allocation2 [shape = 'u8[8192]{0}', space=vmem, size = 0x2000, scoped, tag = 'input window, operand 0, single buffered']
    #allocation3 [shape = 's32[1]{0}', space=sflag, size = 0x4, scoped, tag = 'scoped memory for tpu_custom_call.1']
    #allocation4 [shape = 's32[1]{0}', space=sflag, size = 0x4, scoped, tag = 'scoped memory for tpu_custom_call.1']
    #allocation5 [shape = 'u8[65536]{0}', space=vmem, size = 0x10000, scoped, tag = 'input window, operand 1, single buffered']
    #allocation6 [shape = 's32[1]{0}', space=sflag, size = 0x4, scoped, tag = 'scoped memory for tpu_custom_call.1']
    #allocation7 [shape = 'u8[8192]{0}', space=vmem, size = 0x2000, scoped, tag = 'output window, operand 0, single buffered']
    %7 = vsyncpa [#allocation3], 0
    %8 = vsyncpa [#allocation6], 0
    %9 = vsyncpa [#allocation4], 0
    // Predicated region
    $region2: #{tpu_custom_call.1} parent=1 // pred_check
      _
    $region3: #{tpu_custom_call.1} parent=1 // pred_check_branch
      %11 = sbr.rel (0) target = $region5
    $region4: #{tpu_custom_call.1} parent=1 // pred_region
      %13 = vsyncadd [#allocation3], 0
      %s14 = sshll.u32 %s0, 4
      %s15 = int_to_ptr.hbm [resolvable:$true] %s14
      %s16 = sshll.u32 [#allocation2], 4
      %s17 = int_to_ptr.vmem [resolvable:$true] %s16
      %22 = dma.hbm_to_vmem [thread:$0]  %s15, 256, %s17, [#allocation3], 128, 128, 8
    $region5: #{tpu_custom_call.1} parent=1 // pred_fallthru
      _
    // Predicated region
    $region6: #{tpu_custom_call.1} parent=1 // pred_check
      _
    $region7: #{tpu_custom_call.1} parent=1 // pred_check_branch
      %24 = sbr.rel (0) target = $region9
    $region8: #{tpu_custom_call.1} parent=1 // pred_region
      %26 = vsyncadd [#allocation6], 0
      %s27 = sshll.u32 %s1, 4
      %s28 = int_to_ptr.hbm [resolvable:$true] %s27
      %s29 = sshll.u32 [#allocation5], 4
      %s30 = int_to_ptr.vmem [resolvable:$true] %s29
      %35 = dma.hbm_to_vmem [thread:$0]  %s28, 2048, %s30, [#allocation6], 128, 128, 8
    $region9: #{tpu_custom_call.1} parent=1 // pred_fallthru
      _
    // Predicated region
    $region10: #{tpu_custom_call.1} parent=1 // pred_check
      _
    $region11: #{tpu_custom_call.1} parent=1 // pred_check_branch
      %37 = sbr.rel (0) target = $region13
    $region12: #{tpu_custom_call.1} parent=1 // pred_region
      %39 = dma.done [#allocation3], 256
    $region13: #{tpu_custom_call.1} parent=1 // pred_fallthru
      _
    // Predicated region
    $region14: #{tpu_custom_call.1} parent=1 // pred_check
      _
    $region15: #{tpu_custom_call.1} parent=1 // pred_check_branch
      %41 = sbr.rel (0) target = $region17
    $region16: #{tpu_custom_call.1} parent=1 // pred_region
      %43 = dma.done [#allocation6], 2048
    $region17: #{tpu_custom_call.1} parent=1 // pred_fallthru
      _
    %v44 = vld [vmem:[#allocation2] sm:$0xff]
    %v45 = vld [vmem:[#allocation2 + $0x8] sm:$0xff]
    %v46 = vld [vmem:[#allocation5] sm:$0xff]
    %v47 = vld [vmem:[#allocation5 + $0x8] sm:$0xff]
    %v48 = vld [vmem:[#allocation5 + $0x10] sm:$0xff]
    %v49 = vld [vmem:[#allocation5 + $0x18] sm:$0xff]
    %v50 = vld [vmem:[#allocation5 + $0x20] sm:$0xff]
    %v51 = vld [vmem:[#allocation5 + $0x28] sm:$0xff]
    %v52 = vld [vmem:[#allocation5 + $0x30] sm:$0xff]
    %v53 = vld [vmem:[#allocation5 + $0x38] sm:$0xff]
    %v54 = vld [vmem:[#allocation5 + $0x40] sm:$0xff]
    %v55 = vld [vmem:[#allocation5 + $0x48] sm:$0xff]
    %v56 = vld [vmem:[#allocation5 + $0x50] sm:$0xff]
    %v57 = vld [vmem:[#allocation5 + $0x58] sm:$0xff]
    %v58 = vld [vmem:[#allocation5 + $0x60] sm:$0xff]
    %v59 = vld [vmem:[#allocation5 + $0x68] sm:$0xff]
    %v60 = vld [vmem:[#allocation5 + $0x70] sm:$0xff]
    %v61 = vld [vmem:[#allocation5 + $0x78] sm:$0xff]
    %62 = vmatpush.msra.mxu0 %v61
    %63 = vmatpush.msra.mxu0 %v60
    %64 = vmatpush.msra.mxu0 %v59
    %65 = vmatpush.msra.mxu0 %v58
    %66 = vmatpush.msra.mxu0 %v57
    %67 = vmatpush.msra.mxu0 %v56
    %68 = vmatpush.msra.mxu0 %v55
    %69 = vmatpush.msra.mxu0 %v54
    %70 = vmatpush.msra.mxu0 %v53
    %71 = vmatpush.msra.mxu0 %v52
    %72 = vmatpush.msra.mxu0 %v51
    %73 = vmatpush.msra.mxu0 %v50
    %74 = vmatpush.msra.mxu0 %v49
    %75 = vmatpush.msra.mxu0 %v48
    %76 = vmatpush.msra.mxu0 %v47
    %77 = vmatpush.msra.mxu0 %v46
    %78 = vmatmul.f32.gmra.mxu0 %v44
    %v79 = vpop.f32.mrf.mxu0
    %v80 = vadd.f32 0.0, %v79
    %81 = vmatmul.f32.gmra.mxu0 %v45
    %v82 = vpop.f32.mrf.mxu0
    %v83 = vadd.f32 0.0, %v82
    %84 = vdwg.mxu0
    %85 = vst [vmem:[#allocation7] sm:$0xff] %v80
    %86 = vst [vmem:[#allocation7 + $0x8] sm:$0xff] %v83
    // Predicated region
    $region18: #{tpu_custom_call.1} parent=1 // pred_check
      _
    $region19: #{tpu_custom_call.1} parent=1 // pred_check_branch
      %88 = sbr.rel (0) target = $region21
    $region20: #{tpu_custom_call.1} parent=1 // pred_region
      %90 = vsyncadd [#allocation4], 0
      %s91 = sshll.u32 [#allocation7], 4
      %s92 = int_to_ptr.vmem [resolvable:$true] %s91
      %s93 = sshll.u32 %s2, 4
      %s94 = int_to_ptr.hbm [resolvable:$true] %s93
      %99 = dma.vmem_to_hbm [thread:$0]  %s92, 256, %s94, [#allocation4], 128, 128, 8
    $region21: #{tpu_custom_call.1} parent=1 // pred_fallthru
      _
    // Predicated region
    $region22: #{tpu_custom_call.1} parent=1 // pred_check
      _
    $region23: #{tpu_custom_call.1} parent=1 // pred_check_branch
      %101 = sbr.rel (0) target = $region25
    $region24: #{tpu_custom_call.1} parent=1 // pred_region
      %103 = dma.done [#allocation4], 256
    $region25: #{tpu_custom_call.1} parent=1 // pred_fallthru
      _
    %104 = vsyncpa [#allocation3], 1
    %105 = vsyncpa [#allocation6], 1
    %106 = vsyncpa [#allocation4], 1

</llo_original>
